<compile_context>
chip_gen: v7x
topology: tpu7x:2x2x1
jax: 0.10.0
libtpu: 0.0.40
codegen_flags: <defaults>
</compile_context>

<pallas_src>
import jax
import jax.numpy as jnp
import numpy as np
from jax import lax
from jax.experimental import pallas as pl
from jax.experimental.pallas import tpu as pltpu

MAX_HOLES = 4     # n_holes in the PyTorch module
MAX_LENGTH = 0.4  # length in the PyTorch module


# ----------------------------------------------------------------------------
# Kernel: pure elementwise multiply, (tile_nc, tile_hw) image block x
# (1, tile_hw) mask row (sublane-broadcast is free VPU/XLU work; HBM-bound).
# ----------------------------------------------------------------------------
def cutout_kernel(mask_ref, img_ref, out_ref):
    out_ref[...] = img_ref[...] * mask_ref[...]


# ----------------------------------------------------------------------------
# Sampling (mirrors the torch forward) + mask construction (plain JAX, tiny).
# ----------------------------------------------------------------------------
def sample_cutout_params(key, H, W, max_holes=MAX_HOLES, max_length=MAX_LENGTH):
    """Returns rects int32[max_holes, 4] = [y1,y2,x1,x2] and n_holes."""
    k_n, k_lh, k_lw, k_y, k_x = jax.random.split(key, 5)
    n_holes = jax.random.randint(k_n, (), 0, max_holes, dtype=jnp.int32)
    length_h = (H * jax.random.uniform(k_lh, ()) * max_length).astype(jnp.int32)
    length_w = (W * jax.random.uniform(k_lw, ()) * max_length).astype(jnp.int32)
    ys = jax.random.randint(k_y, (max_holes,), 0, H, dtype=jnp.int32)
    xs = jax.random.randint(k_x, (max_holes,), 0, W, dtype=jnp.int32)
    y1 = jnp.clip(ys - length_h // 2, 0, H)
    y2 = jnp.clip(ys + length_h // 2, 0, H)
    x1 = jnp.clip(xs - length_w // 2, 0, W)
    x2 = jnp.clip(xs + length_w // 2, 0, W)
    rects = jnp.stack([y1, y2, x1, x2], axis=-1).astype(jnp.int32)
    return rects, n_holes


def build_mask(rects, n_holes, H, W, max_holes, dtype):
    """(1, H*W) 0/1 mask, built once (identical for all N*C images)."""
    row = lax.broadcasted_iota(jnp.int32, (H, W), 0)
    col = lax.broadcasted_iota(jnp.int32, (H, W), 1)
    hole = jnp.zeros((H, W), jnp.bool_)
    for n in range(max_holes):  # max_holes is small & static -> unrolled
        y1, y2, x1, x2 = rects[n, 0], rects[n, 1], rects[n, 2], rects[n, 3]
        in_rect = (row >= y1) & (row < y2) & (col >= x1) & (col < x2)
        hole = hole | (in_rect & (n < n_holes))
    mask = jnp.where(hole, jnp.zeros((), dtype), jnp.ones((), dtype))
    return mask.reshape(1, H * W)


# ----------------------------------------------------------------------------
# Blocking heuristics
# ----------------------------------------------------------------------------
def _vmem_capacity_bytes():
    try:
        return int(pltpu.get_tpu_info().vmem_capacity_bytes)
    except Exception:
        return 64 << 20  # conservative: v7x per-TensorCore VMEM


def _sublane_pack(dtype):
    # Native sublane packing: 8 rows for 32-bit, 16 for 16-bit, 32 for 8-bit.
    itemsize = np.dtype(dtype).itemsize
    return 8 * max(1, 4 // itemsize)


def _pick_tiles(nc, hw, dtype, target_block_bytes):
    """Pick (tile_nc, tile_hw) obeying the (8,128) rule, keeping blocks near
    the target size and guaranteeing a deep grid for large arrays."""
    itemsize = np.dtype(dtype).itemsize
    pack = _sublane_pack(dtype)
    total_bytes = nc * hw * itemsize
    cdiv = lambda a, b: -(-a // b)

    # Lane (HW) axis: full extent when small, else multiple-of-128 chunks
    # sized so that even at the minimum sublane tile the block fits budget.
    max_hw_elems = max(128, (target_block_bytes // (pack * itemsize)) // 128 * 128)
    tile_hw = hw if hw <= max_hw_elems else max_hw_elems

    # Sublane (N*C) axis: fill up to the block-byte target, rounded to packing.
    tile_nc = max(1, target_block_bytes // max(1, tile_hw * itemsize))
    if tile_nc >= nc:
        tile_nc = nc
    else:
        tile_nc = max(pack, (tile_nc // pack) * pack)

    # Deepen the grid (>= 8 steps) for large arrays so both v7x TensorCores
    # are fed and the double-buffer has overlap; keep blocks >= ~512 KiB so
    # we stay in the high-roofline-fraction regime.
    if total_bytes >= (16 << 20):
        min_block_bytes = 512 << 10
        n_steps = lambda: cdiv(nc, tile_nc) * cdiv(hw, tile_hw)
        while (n_steps() < 8 and tile_nc > pack
               and (tile_nc // 2) * tile_hw * itemsize >= min_block_bytes):
            tile_nc = max(pack, ((tile_nc // 2) // pack) * pack)
        while (n_steps() < 8 and tile_hw > 512 and tile_hw % 256 == 0
               and tile_nc * (tile_hw // 2) * itemsize >= min_block_bytes):
            tile_hw //= 2
    return int(tile_nc), int(tile_hw)


# ----------------------------------------------------------------------------
# Wrapper
# ----------------------------------------------------------------------------
def cutout(img, key, max_holes=MAX_HOLES, max_length=MAX_LENGTH):
    N, C, H, W = img.shape
    NC, HW = N * C, H * W
    rects, n_holes = sample_cutout_params(key, H, W, max_holes, max_length)
    mask = build_mask(rects, n_holes, H, W, max_holes, img.dtype)  # (1, HW)
    img_flat = img.reshape(NC, HW)  # lane-dense layout: last dim is H*W

    itemsize = np.dtype(img.dtype).itemsize
    vmem_cap = _vmem_capacity_bytes()
    # ~4 MiB blocks on 128 MiB-VMEM chips (v5e/v6e), ~2 MiB on 64 MiB (v7x).
    target_block_bytes = (4 << 20) if vmem_cap >= (96 << 20) else (2 << 20)
    # Raise the scoped-VMEM limit so v5e's 16 MiB default never binds; stays
    # at/below half the physical capacity on every generation.
    vmem_limit = int(min(64 << 20, max(32 << 20, vmem_cap // 2)))

    tile_nc, tile_hw = _pick_tiles(NC, HW, img.dtype, target_block_bytes)
    n_nc = pl.cdiv(NC, tile_nc)
    n_hw = pl.cdiv(HW, tile_hw)

    out_flat = pl.pallas_call(
        cutout_kernel,
        out_shape=jax.ShapeDtypeStruct((NC, HW), img.dtype),
        # HW chunks outer, NC chunks inner: the mask's block index is constant
        # across the inner axis, so Pallas dedups its DMA (one fetch per chunk).
        grid=(n_hw, n_nc),
        in_specs=[
            pl.BlockSpec((1, tile_hw), lambda j, i: (0, j)),        # mask row
            pl.BlockSpec((tile_nc, tile_hw), lambda j, i: (i, j)),  # image
        ],
        out_specs=pl.BlockSpec((tile_nc, tile_hw), lambda j, i: (i, j)),
        compiler_params=pltpu.CompilerParams(
            dimension_semantics=("parallel", "parallel"),
            vmem_limit_bytes=vmem_limit),
        cost_estimate=pl.CostEstimate(
            flops=NC * HW,
            transcendentals=0,
            bytes_accessed=(2 * NC * HW + HW) * itemsize),
    )(mask, img_flat)
    return out_flat.reshape(N, C, H, W)


# ----------------------------------------------------------------------------
# Pure-numpy reference reproducing the PyTorch forward with the same samples.
# ----------------------------------------------------------------------------
def cutout_reference(img, key, max_holes=MAX_HOLES, max_length=MAX_LENGTH):
    N, C, H, W = img.shape
    rects, n_holes = sample_cutout_params(key, H, W, max_holes, max_length)
    rects = np.asarray(rects)
    n = int(np.asarray(n_holes))
    img_np = np.asarray(img)
    mask = np.ones((H, W), img_np.dtype)
    for i in range(n):
        y1, y2, x1, x2 = rects[i]
        mask[y1:y2, x1:x2] = 0
    return img_np * mask[None, None, :, :]


if __name__ == "__main__":
    key = jax.random.PRNGKey(0)
    k_img, k_cut = jax.random.split(key)
    img = jax.random.normal(k_img, (2, 4, 16, 16), dtype=jnp.float32)

    ref = cutout_reference(img, k_cut)
    out = jax.jit(cutout)(img, k_cut)
    out = jax.block_until_ready(out)

    assert out.shape == img.shape and out.dtype == img.dtype
    np.testing.assert_allclose(np.asarray(out), ref, rtol=0, atol=0)
    print("KERNEL_OK")
</pallas_src>

<mosaic_0001>
module attributes {stable_mosaic.version = 11 : i64} {
  func.func @cutout_kernel(%arg0: i32, %arg1: i32, %arg2: memref<1x256xf32, #tpu.memory_space<vmem>>, %arg3: memref<8x256xf32, #tpu.memory_space<vmem>>, %arg4: memref<8x256xf32, #tpu.memory_space<vmem>>) attributes {dimension_semantics = [#tpu.dimension_semantics<parallel>, #tpu.dimension_semantics<parallel>], iteration_bounds = array<i64: 1, 1>, scalar_prefetch = 0 : i64, scratch_operands = 0 : i64, tpu.core_type = #tpu.core_type<tc>, window_params = [{transform_indices = @transform_0, window_bounds = array<i64: 1, 256>}, {transform_indices = @transform_1, window_bounds = array<i64: 8, 256>}, {transform_indices = @transform_2, window_bounds = array<i64: 8, 256>}]} {
    %c0 = arith.constant 0 : index
    %c0_0 = arith.constant 0 : index
    %0 = vector.load %arg3[%c0, %c0_0] : memref<8x256xf32, #tpu.memory_space<vmem>>, vector<8x256xf32>
    %c0_1 = arith.constant 0 : index
    %c0_2 = arith.constant 0 : index
    %1 = vector.load %arg2[%c0_1, %c0_2] : memref<1x256xf32, #tpu.memory_space<vmem>>, vector<1x256xf32>
    %2 = vector.broadcast %1 : vector<1x256xf32> to vector<8x256xf32>
    %3 = arith.mulf %0, %2 : vector<8x256xf32>
    %c0_3 = arith.constant 0 : index
    %c0_4 = arith.constant 0 : index
    %4 = vector.load %arg4[%c0_3, %c0_4] : memref<8x256xf32, #tpu.memory_space<vmem>>, vector<8x256xf32>
    tpu.vector_store %arg4[%c0_3, %c0_4], %3 {strides = array<i32>} : memref<8x256xf32, #tpu.memory_space<vmem>>, vector<8x256xf32>,
    return
  }
  func.func @transform_0(%arg0: i32, %arg1: i32) -> (i32, i32) {
    %c0_i32 = arith.constant 0 : i32
    %c0_i32_0 = arith.constant 0 : i32
    return %c0_i32, %arg0 : i32, i32
  }
  func.func @transform_1(%arg0: i32, %arg1: i32) -> (i32, i32) {
    %c0_i32 = arith.constant 0 : i32
    return %arg1, %arg0 : i32, i32
  }
  func.func @transform_2(%arg0: i32, %arg1: i32) -> (i32, i32) {
    %c0_i32 = arith.constant 0 : i32
    return %arg1, %arg0 : i32, i32
  }
}

</mosaic_0001>

<llo_original>
// kernel: cutout.1
$region0: #{cutout.1}
  #allocation0 [shape = 'u32[]', space=smem, size = 0x4, offset = 0x4, fixed_abs, tag = 'smem constant byte address 0x4 - core index']
  #allocation1 [shape = 'u32[144,128]{1,0:T(1,128)}', space=vmem, size = 0x12000, scoped, tag = 'internal scratch']
  %s0 = inlined_call_operand.vmem [shape: f32[1,256], index: 0, kind: input, shape index: {}]
  %s1 = inlined_call_operand.vmem [shape: f32[8,256], index: 1, kind: input, shape index: {}]
  %s2 = inlined_call_operand.vmem [shape: f32[8,256], index: 2, kind: output, shape index: {}]
  %s3 = sld [smem:[#allocation0]]
  $region18: #{cutout.1} parent=0
    _
  %s5 = ssub.s32 1, %s3
  %s6 = scalar_select 0, %s5, %s3
  // Predicated region
  $region2: #{cutout.1} parent=0 // pred_check
    _
  $region3: #{cutout.1} parent=0 // pred_check_branch
    %8 = sbr.rel (0) target = $region5
  $region4: #{cutout.1} parent=0 // pred_region
    _
  $region5: #{cutout.1} parent=0 // pred_fallthru
    _
  // Predicated region
  $region6: #{cutout.1} parent=0 // pred_check
    _
  $region7: #{cutout.1} parent=0 // pred_check_branch
    %10 = sbr.rel (0) target = $region9
  $region8: #{cutout.1} parent=0 // pred_region
    _
  $region9: #{cutout.1} parent=0 // pred_fallthru
    _
  %v11 = vld [vmem:[%s1] sm:$0xff]
  %v12 = vld [vmem:[%s1 + $0x8] sm:$0xff]
  %v13 = vld [vmem:[%s0] sm:$0x3]
  %v15 = vlaneseq
  %v16 = vshrl.u32 %v15, 7
  %v17 = vsub.s32 0, %v16
  %v18 = vrot.slane %v13, %v17
  %v19 = vlaneseq
  %v20 = vshrl.u32 %v19, 7
  %v21 = vsub.s32 1, %v20
  %v22 = vrot.slane %v13, %v21
  %v25 = vmul.f32 %v11, %v18
  %v26 = vmul.f32 %v12, %v22
  %27 = vst [vmem:[%s2] sm:$0xff] %v25
  %28 = vst [vmem:[%s2 + $0x8] sm:$0xff] %v26
  // Predicated region
  $region10: #{cutout.1} parent=0 // pred_check
    _
  $region11: #{cutout.1} parent=0 // pred_check_branch
    %30 = sbr.rel (0) target = $region13
  $region12: #{cutout.1} parent=0 // pred_region
    _
  $region13: #{cutout.1} parent=0 // pred_fallthru
    _
  // Predicated region
  $region14: #{cutout.1} parent=0 // pred_check
    _
  $region15: #{cutout.1} parent=0 // pred_check_branch
    %32 = sbr.rel (0) target = $region17
  $region16: #{cutout.1} parent=0 // pred_region
    _
  $region17: #{cutout.1} parent=0 // pred_fallthru
    _

</llo_original>
